<compile_context>
chip_gen: v5e
topology: v5e:2x2
jax: 0.10.0
libtpu: 0.0.40
codegen_flags: <defaults>
</compile_context>

<pallas_src>
import math

import numpy as np
import jax
import jax.numpy as jnp
from jax.experimental import pallas as pl
from jax.experimental.pallas import tpu as pltpu

EMPTY_THRESHOLD = 1e-6
ALPHA = 0.15
SIGMA = 2.0
EPS = 1e-6


# --------------------------------------------------------------------------- #
# Chip-dependent packing parameters
# --------------------------------------------------------------------------- #
def _chip_params():
    """(packed tile edge, TensorCores per chip) for the attached TPU generation."""
    tile, cores = 128, 1
    try:
        kind = jax.devices()[0].device_kind.lower()
    except Exception:
        return tile, cores
    if ("v6" in kind) or ("v7" in kind):
        tile = 256        # 2x256x256 MXU: 128-wide tiles only quarter-fill it
    if "v7" in kind:
        cores = 2         # 2 TCs/chip -> want >= 2 parallel grid blocks
    return tile, cores


# --------------------------------------------------------------------------- #
# Kernel
# --------------------------------------------------------------------------- #
def _lime_kernel(x_ref, gh_ref, gw_ref, mh_ref, mv_ref, out_ref):
    T = x_ref[0, 0]        # (TH, TW) packed T_theta (invalid patches already zeroed)
    That = x_ref[0, 1]     # (TH, TW) packed T_hat = max_c Lc (same masking)
    Gh = gh_ref[...]       # (TH, TH) bf16 block-diagonal Gaussian band
    Gw = gw_ref[...]       # (TW, TW) bf16 block-diagonal Gaussian band
    m_h = mh_ref[...]      # (TH, TW) f32: 1 except last column of each packed patch
    m_v = mv_ref[...]      # (TH, TW) f32: 1 except last row of each packed patch

    def _sum_all(x):       # full-tile reduction to (1, 1) via two axis reduces (XLU)
        return jnp.sum(jnp.sum(x, axis=-1, keepdims=True), axis=-2, keepdims=True)

    def _smooth(abs_g):    # separable Gaussian "same" conv as bf16 band matmuls
        inner = jnp.dot(abs_g.astype(jnp.bfloat16), Gw,
                        preferred_element_type=jnp.float32).astype(jnp.bfloat16)
        return jnp.dot(Gh, inner, preferred_element_type=jnp.float32)

    # ---- H-direction pipeline (short live ranges) ----
    gh_hat = (jnp.roll(That, shift=-1, axis=1) - That) * m_h
    w_h = pl.reciprocal(_smooth(jnp.abs(gh_hat)) + EPS, approx=True)   # EUP
    gh_th = (jnp.roll(T, shift=-1, axis=1) - T) * m_h
    str_blk = _sum_all(gh_th * gh_th * w_h)

    # ---- V-direction pipeline ----
    gv_hat = (jnp.roll(That, shift=-1, axis=0) - That) * m_v
    w_v = pl.reciprocal(_smooth(jnp.abs(gv_hat)) + EPS, approx=True)
    gv_th = (jnp.roll(T, shift=-1, axis=0) - T) * m_v
    str_blk = str_blk + _sum_all(gv_th * gv_th * w_v)

    # ---- fidelity term (kept in f32 end-to-end) ----
    d = That - T
    fid_blk = _sum_all(d * d)

    # per-block partials: sublane 0 -> fidelity sum, sublane 1 -> structure sum
    sub = jax.lax.broadcasted_iota(jnp.int32, (8, 128), 0)
    out_ref[0] = jnp.where(sub == 0, fid_blk,
                           jnp.where(sub == 1, str_blk, 0.0))


# --------------------------------------------------------------------------- #
# Constant matrices (built once in numpy)
# --------------------------------------------------------------------------- #
def _gauss_1d():
    k = int(math.ceil(3 * SIGMA)) * 2 + 1   # 13
    r = k // 2                              # 6
    coords = np.arange(k, dtype=np.float64) - r
    g = np.exp(-coords ** 2 / (2 * SIGMA ** 2))
    g = g / g.sum()
    return g.astype(np.float32), r


def _band(n, g, r):
    M = np.zeros((n, n), np.float32)
    for a in range(n):
        for b in range(max(0, a - r), min(n, a + r + 1)):
            M[a, b] = g[b - a + r]
    return M


def _block_diag(block, reps):
    n = block.shape[0]
    out = np.zeros((n * reps, n * reps), np.float32)
    for i in range(reps):
        out[i * n:(i + 1) * n, i * n:(i + 1) * n] = block
    return out


def _boundary_masks(ph, H, pw, W):
    TH, TW = ph * H, pw * W
    not_last_col = (np.arange(TW) % W) != (W - 1)
    not_last_row = (np.arange(TH) % H) != (H - 1)
    m_h = np.ascontiguousarray(
        np.broadcast_to(not_last_col[None, :], (TH, TW)).astype(np.float32))
    m_v = np.ascontiguousarray(
        np.broadcast_to(not_last_row[:, None], (TH, TW)).astype(np.float32))
    return m_h, m_v


# --------------------------------------------------------------------------- #
# Wrapper (jitted so max / mask / pad / pack fuse into one XLA pass)
# --------------------------------------------------------------------------- #
@jax.jit
def lime_loss(T_pred, Lc):
    """T_pred: (bsz, patches, H, W) f32; Lc: (bsz, patches, H, W, 3) f32."""
    bsz, num_patches, H, W = T_pred.shape
    P = bsz * num_patches

    T = T_pred.reshape(P, H, W).astype(jnp.float32)
    That = Lc.reshape(P, H, W, 3).astype(jnp.float32).max(axis=-1)

    # Exact per-patch validity (same comparison as the reference), folded into
    # the data: invalid / padded patches are zeroed -> contribute exactly zero
    # to both loss terms, so the kernel needs no validity input at all.
    patch_mean = T.reshape(P, -1).mean(axis=-1)
    valid = patch_mean > EMPTY_THRESHOLD
    n = jnp.sum(valid.astype(jnp.float32))
    vm = valid.astype(jnp.float32)[:, None, None]

    X = jnp.stack([T * vm, That * vm], axis=1)          # (P, 2, H, W)

    # packing factors: lane-dense tiles up to (tile, tile)
    tile, cores = _chip_params()
    pw = min(max(1, tile // W), P)
    ph = min(max(1, tile // H), -(-P // pw))
    # v7x has 2 TensorCores: avoid collapsing the parallel grid to one block
    while (-(-P // (ph * pw))) < cores and ph > 1:
        ph = -(-ph // 2)
    PB = ph * pw
    nb = -(-P // PB)
    P_pad = nb * PB
    if P_pad != P:
        X = jnp.concatenate(
            [X, jnp.zeros((P_pad - P, 2, H, W), jnp.float32)], axis=0)

    TH, TW = ph * H, pw * W
    X = X.reshape(nb, ph, pw, 2, H, W)
    X = jnp.transpose(X, (0, 3, 1, 4, 2, 5)).reshape(nb, 2, TH, TW)

    g1, r = _gauss_1d()
    Gh = jnp.asarray(_block_diag(_band(H, g1, r), ph), jnp.bfloat16)   # (TH, TH)
    Gw = jnp.asarray(_block_diag(_band(W, g1, r), pw), jnp.bfloat16)   # (TW, TW)
    m_h_np, m_v_np = _boundary_masks(ph, H, pw, W)
    Mh = jnp.asarray(m_h_np)
    Mv = jnp.asarray(m_v_np)

    grid_spec = pltpu.PrefetchScalarGridSpec(
        num_scalar_prefetch=0,
        grid=(nb,),
        in_specs=[
            pl.BlockSpec((1, 2, TH, TW), lambda b: (b, 0, 0, 0)),  # packed T / T_hat
            pl.BlockSpec((TH, TH), lambda b: (0, 0)),              # Gh (bf16, resident)
            pl.BlockSpec((TW, TW), lambda b: (0, 0)),              # Gw (bf16, resident)
            pl.BlockSpec((TH, TW), lambda b: (0, 0)),              # not-last-col mask
            pl.BlockSpec((TH, TW), lambda b: (0, 0)),              # not-last-row mask
        ],
        out_specs=pl.BlockSpec((1, 8, 128), lambda b: (b, 0, 0)),
    )

    partials = pl.pallas_call(
        _lime_kernel,
        out_shape=jax.ShapeDtypeStruct((nb, 8, 128), jnp.float32),
        grid_spec=grid_spec,
        compiler_params=pltpu.CompilerParams(
            dimension_semantics=("parallel",)),   # independent blocks -> 2 TCs on v7x
    )(X, Gh, Gw, Mh, Mv)

    # tiny final reduction / normalization in plain JAX
    fid_total = partials[:, 0, 0].sum()
    str_total = partials[:, 1, 0].sum()
    loss = (fid_total + ALPHA * str_total) / jnp.maximum(n, 1.0)
    return jnp.where(n > 0.0, loss, 0.0)


# --------------------------------------------------------------------------- #
# Plain-JAX reference mirroring the PyTorch module (for sanity check)
# --------------------------------------------------------------------------- #
def lime_loss_ref(T_pred, Lc):
    bsz, num_patches, H, W = T_pred.shape
    P = bsz * num_patches
    T = T_pred.reshape(P, H, W).astype(jnp.float32)
    Lcf = Lc.reshape(P, H, W, 3).astype(jnp.float32)

    mean_t = T.reshape(P, -1).mean(-1)
    valid = (mean_t > EMPTY_THRESHOLD).astype(jnp.float32)
    n = valid.sum()

    T_hat = Lcf.max(-1)
    fid = ((T_hat - T) ** 2).sum(axis=(1, 2))

    def grad_h(a):
        return jnp.pad(a[:, :, 1:] - a[:, :, :-1], ((0, 0), (0, 0), (0, 1)))

    def grad_v(a):
        return jnp.pad(a[:, 1:, :] - a[:, :-1, :], ((0, 0), (0, 1), (0, 0)))

    gh_hat, gv_hat = grad_h(T_hat), grad_v(T_hat)
    gh_th, gv_th = grad_h(T), grad_v(T)

    k = int(math.ceil(3 * SIGMA)) * 2 + 1
    r = k // 2
    coords = jnp.arange(k, dtype=jnp.float32) - r
    kern = jnp.exp(-(coords[None, :] ** 2 + coords[:, None] ** 2) / (2 * SIGMA ** 2))
    kern = kern / kern.sum()
    kern4 = kern[None, None]

    def conv(a):
        return jax.lax.conv_general_dilated(
            a[:, None], kern4, (1, 1), padding=[(r, r), (r, r)])[:, 0]

    denom_h = conv(jnp.abs(gh_hat))
    denom_v = conv(jnp.abs(gv_hat))
    reg = gh_th ** 2 / (denom_h + EPS) + gv_th ** 2 / (denom_v + EPS)
    struct = reg.sum(axis=(1, 2))

    total = (fid * valid).sum() / n + ALPHA * (struct * valid).sum() / n
    return jnp.where(n > 0, total, 0.0)


if __name__ == "__main__":
    key = jax.random.PRNGKey(0)
    k1, k2 = jax.random.split(key)

    bsz, patches, H, W = 2, 4, 16, 16
    T_pred = jax.random.uniform(k1, (bsz, patches, H, W), jnp.float32)
    # make one patch "empty" so the validity filtering path is exercised
    T_pred = T_pred.at[0, 1].set(0.0)
    Lc = jax.random.uniform(k2, (bsz, patches, H, W, 3), jnp.float32)

    out = jax.block_until_ready(lime_loss(T_pred, Lc))
    ref = jax.block_until_ready(lime_loss_ref(T_pred, Lc))

    # loose tolerance: approx reciprocal + bf16 MXU smoothing vs XLA f32 conv
    np.testing.assert_allclose(np.asarray(out), np.asarray(ref), rtol=5e-2, atol=1e-3)
    print("KERNEL_OK")
</pallas_src>

<mosaic_0001>
module attributes {stable_mosaic.version = 11 : i64} {
  func.func @_lime_kernel(%arg0: i32, %arg1: memref<1x2x16x128xf32, #tpu.memory_space<vmem>>, %arg2: memref<16x16xbf16, #tpu.memory_space<vmem>>, %arg3: memref<128x128xbf16, #tpu.memory_space<vmem>>, %arg4: memref<16x128xf32, #tpu.memory_space<vmem>>, %arg5: memref<16x128xf32, #tpu.memory_space<vmem>>, %arg6: memref<1x8x128xf32, #tpu.memory_space<vmem>>) attributes {dimension_semantics = [#tpu.dimension_semantics<parallel>], iteration_bounds = array<i64: 1>, scalar_prefetch = 0 : i64, scratch_operands = 0 : i64, tpu.core_type = #tpu.core_type<tc>, window_params = [{transform_indices = @transform_0, window_bounds = array<i64: 1, 2, 16, 128>}, {pipeline_mode = #tpu.pipeline_mode<synchronous>, transform_indices = @transform_1, window_bounds = array<i64: 16, 16>}, {pipeline_mode = #tpu.pipeline_mode<synchronous>, transform_indices = @transform_2, window_bounds = array<i64: 128, 128>}, {pipeline_mode = #tpu.pipeline_mode<synchronous>, transform_indices = @transform_3, window_bounds = array<i64: 16, 128>}, {pipeline_mode = #tpu.pipeline_mode<synchronous>, transform_indices = @transform_4, window_bounds = array<i64: 16, 128>}, {transform_indices = @transform_5, window_bounds = array<i64: 1, 8, 128>}]} {
    %c0 = arith.constant 0 : index
    %c0_0 = arith.constant 0 : index
    %c0_1 = arith.constant 0 : index
    %c0_2 = arith.constant 0 : index
    %0 = vector.load %arg1[%c0, %c0_0, %c0_1, %c0_2] : memref<1x2x16x128xf32, #tpu.memory_space<vmem>>, vector<1x1x16x128xf32>
    %1 = vector.shape_cast %0 : vector<1x1x16x128xf32> to vector<16x128xf32>
    %c0_3 = arith.constant 0 : index
    %c1 = arith.constant 1 : index
    %c0_4 = arith.constant 0 : index
    %c0_5 = arith.constant 0 : index
    %2 = vector.load %arg1[%c0_3, %c1, %c0_4, %c0_5] : memref<1x2x16x128xf32, #tpu.memory_space<vmem>>, vector<1x1x16x128xf32>
    %3 = vector.shape_cast %2 : vector<1x1x16x128xf32> to vector<16x128xf32>
    %c0_6 = arith.constant 0 : index
    %c0_7 = arith.constant 0 : index
    %4 = vector.load %arg2[%c0_6, %c0_7] : memref<16x16xbf16, #tpu.memory_space<vmem>>, vector<16x16xbf16>
    %c0_8 = arith.constant 0 : index
    %c0_9 = arith.constant 0 : index
    %5 = vector.load %arg3[%c0_8, %c0_9] : memref<128x128xbf16, #tpu.memory_space<vmem>>, vector<128x128xbf16>
    %c0_10 = arith.constant 0 : index
    %c0_11 = arith.constant 0 : index
    %6 = vector.load %arg4[%c0_10, %c0_11] : memref<16x128xf32, #tpu.memory_space<vmem>>, vector<16x128xf32>
    %c0_12 = arith.constant 0 : index
    %c0_13 = arith.constant 0 : index
    %7 = vector.load %arg5[%c0_12, %c0_13] : memref<16x128xf32, #tpu.memory_space<vmem>>, vector<16x128xf32>
    %8 = vector.extract_strided_slice %3 {offsets = [0, 1], sizes = [16, 127], strides = [1, 1]} : vector<16x128xf32> to vector<16x127xf32>
    %9 = vector.extract_strided_slice %3 {offsets = [0, 0], sizes = [16, 1], strides = [1, 1]} : vector<16x128xf32> to vector<16x1xf32>
    %10 = tpu.concatenate %8, %9 in 1 : vector<16x127xf32>, vector<16x1xf32> -> vector<16x128xf32>
    %11 = arith.subf %10, %3 : vector<16x128xf32>
    %12 = arith.mulf %11, %6 : vector<16x128xf32>
    %13 = math.absf %12 : vector<16x128xf32>
    %14 = arith.truncf %13 : vector<16x128xf32> to vector<16x128xbf16>
    %cst = arith.constant dense<0.000000e+00> : vector<16x128xf32>
    %15 = tpu.matmul %14, %5, %cst {dimension_numbers = #tpu.dot_dimension_numbers<[1], [0], [0], [1], [0, 0, 1, 1], [], []>} : vector<16x128xbf16>, vector<128x128xbf16>, vector<16x128xf32> -> vector<16x128xf32>
    %16 = arith.truncf %15 : vector<16x128xf32> to vector<16x128xbf16>
    %cst_14 = arith.constant dense<0.000000e+00> : vector<16x128xf32>
    %17 = tpu.matmul %4, %16, %cst_14 {dimension_numbers = #tpu.dot_dimension_numbers<[1], [0], [0], [1], [0, 0, 1, 1], [], []>} : vector<16x16xbf16>, vector<16x128xbf16>, vector<16x128xf32> -> vector<16x128xf32>
    %cst_15 = arith.constant 9.99999997E-7 : f32
    %18 = vector.broadcast %cst_15 : f32 to vector<16x128xf32>
    %19 = arith.addf %17, %18 : vector<16x128xf32>
    %20 = tpu.reciprocal %19 {approx = true} : vector<16x128xf32> -> vector<16x128xf32>
    %21 = vector.extract_strided_slice %1 {offsets = [0, 1], sizes = [16, 127], strides = [1, 1]} : vector<16x128xf32> to vector<16x127xf32>
    %22 = vector.extract_strided_slice %1 {offsets = [0, 0], sizes = [16, 1], strides = [1, 1]} : vector<16x128xf32> to vector<16x1xf32>
    %23 = tpu.concatenate %21, %22 in 1 : vector<16x127xf32>, vector<16x1xf32> -> vector<16x128xf32>
    %24 = arith.subf %23, %1 : vector<16x128xf32>
    %25 = arith.mulf %24, %6 : vector<16x128xf32>
    %26 = arith.mulf %25, %25 : vector<16x128xf32>
    %27 = arith.mulf %26, %20 : vector<16x128xf32>
    %cst_16 = arith.constant dense<0.000000e+00> : vector<16xf32>
    %28 = vector.multi_reduction <add>, %27, %cst_16 [1] : vector<16x128xf32> to vector<16xf32>
    %29 = vector.shape_cast %28 : vector<16xf32> to vector<16x1xf32>
    %cst_17 = arith.constant dense<0.000000e+00> : vector<1xf32>
    %30 = vector.multi_reduction <add>, %29, %cst_17 [0] : vector<16x1xf32> to vector<1xf32>
    %31 = vector.shape_cast %30 : vector<1xf32> to vector<1x1xf32>
    %32 = vector.extract_strided_slice %3 {offsets = [1, 0], sizes = [15, 128], strides = [1, 1]} : vector<16x128xf32> to vector<15x128xf32>
    %33 = vector.extract_strided_slice %3 {offsets = [0, 0], sizes = [1, 128], strides = [1, 1]} : vector<16x128xf32> to vector<1x128xf32>
    %34 = tpu.concatenate %32, %33 in 0 : vector<15x128xf32>, vector<1x128xf32> -> vector<16x128xf32>
    %35 = arith.subf %34, %3 : vector<16x128xf32>
    %36 = arith.mulf %35, %7 : vector<16x128xf32>
    %37 = math.absf %36 : vector<16x128xf32>
    %38 = arith.truncf %37 : vector<16x128xf32> to vector<16x128xbf16>
    %cst_18 = arith.constant dense<0.000000e+00> : vector<16x128xf32>
    %39 = tpu.matmul %38, %5, %cst_18 {dimension_numbers = #tpu.dot_dimension_numbers<[1], [0], [0], [1], [0, 0, 1, 1], [], []>} : vector<16x128xbf16>, vector<128x128xbf16>, vector<16x128xf32> -> vector<16x128xf32>
    %40 = arith.truncf %39 : vector<16x128xf32> to vector<16x128xbf16>
    %cst_19 = arith.constant dense<0.000000e+00> : vector<16x128xf32>
    %41 = tpu.matmul %4, %40, %cst_19 {dimension_numbers = #tpu.dot_dimension_numbers<[1], [0], [0], [1], [0, 0, 1, 1], [], []>} : vector<16x16xbf16>, vector<16x128xbf16>, vector<16x128xf32> -> vector<16x128xf32>
    %cst_20 = arith.constant 9.99999997E-7 : f32
    %42 = vector.broadcast %cst_20 : f32 to vector<16x128xf32>
    %43 = arith.addf %41, %42 : vector<16x128xf32>
    %44 = tpu.reciprocal %43 {approx = true} : vector<16x128xf32> -> vector<16x128xf32>
    %45 = vector.extract_strided_slice %1 {offsets = [1, 0], sizes = [15, 128], strides = [1, 1]} : vector<16x128xf32> to vector<15x128xf32>
    %46 = vector.extract_strided_slice %1 {offsets = [0, 0], sizes = [1, 128], strides = [1, 1]} : vector<16x128xf32> to vector<1x128xf32>
    %47 = tpu.concatenate %45, %46 in 0 : vector<15x128xf32>, vector<1x128xf32> -> vector<16x128xf32>
    %48 = arith.subf %47, %1 : vector<16x128xf32>
    %49 = arith.mulf %48, %7 : vector<16x128xf32>
    %50 = arith.mulf %49, %49 : vector<16x128xf32>
    %51 = arith.mulf %50, %44 : vector<16x128xf32>
    %cst_21 = arith.constant dense<0.000000e+00> : vector<16xf32>
    %52 = vector.multi_reduction <add>, %51, %cst_21 [1] : vector<16x128xf32> to vector<16xf32>
    %53 = vector.shape_cast %52 : vector<16xf32> to vector<16x1xf32>
    %cst_22 = arith.constant dense<0.000000e+00> : vector<1xf32>
    %54 = vector.multi_reduction <add>, %53, %cst_22 [0] : vector<16x1xf32> to vector<1xf32>
    %55 = vector.shape_cast %54 : vector<1xf32> to vector<1x1xf32>
    %56 = arith.addf %31, %55 : vector<1x1xf32>
    %57 = arith.subf %3, %1 : vector<16x128xf32>
    %58 = arith.mulf %57, %57 : vector<16x128xf32>
    %cst_23 = arith.constant dense<0.000000e+00> : vector<16xf32>
    %59 = vector.multi_reduction <add>, %58, %cst_23 [1] : vector<16x128xf32> to vector<16xf32>
    %60 = vector.shape_cast %59 : vector<16xf32> to vector<16x1xf32>
    %cst_24 = arith.constant dense<0.000000e+00> : vector<1xf32>
    %61 = vector.multi_reduction <add>, %60, %cst_24 [0] : vector<16x1xf32> to vector<1xf32>
    %62 = vector.shape_cast %61 : vector<1xf32> to vector<1x1xf32>
    %63 = tpu.iota {dimensions = array<i32: 0>} : vector<8x128xi32>
    %c0_i32 = arith.constant 0 : i32
    %64 = vector.broadcast %c0_i32 : i32 to vector<8x128xi32>
    %65 = arith.cmpi eq, %63, %64 : vector<8x128xi32>
    %c1_i32 = arith.constant 1 : i32
    %66 = vector.broadcast %c1_i32 : i32 to vector<8x128xi32>
    %67 = arith.cmpi eq, %63, %66 : vector<8x128xi32>
    %cst_25 = arith.constant 0.000000e+00 : f32
    %68 = vector.shape_cast %56 : vector<1x1xf32> to vector<1x1xf32>
    %69 = vector.broadcast %68 : vector<1x1xf32> to vector<8x128xf32>
    %70 = vector.broadcast %cst_25 : f32 to vector<8x128xf32>
    %71 = arith.select %67, %69, %70 : vector<8x128xi1>, vector<8x128xf32>
    %72 = vector.shape_cast %62 : vector<1x1xf32> to vector<1x1xf32>
    %73 = vector.broadcast %72 : vector<1x1xf32> to vector<8x128xf32>
    %74 = arith.select %65, %73, %71 : vector<8x128xi1>, vector<8x128xf32>
    %c0_26 = arith.constant 0 : index
    %c0_27 = arith.constant 0 : index
    %c0_28 = arith.constant 0 : index
    %75 = vector.load %arg6[%c0_26, %c0_27, %c0_28] : memref<1x8x128xf32, #tpu.memory_space<vmem>>, vector<1x8x128xf32>
    %76 = vector.shape_cast %75 : vector<1x8x128xf32> to vector<8x128xf32>
    %77 = vector.shape_cast %74 : vector<8x128xf32> to vector<1x8x128xf32>
    tpu.vector_store %arg6[%c0_26, %c0_27, %c0_28], %77 {strides = array<i32>} : memref<1x8x128xf32, #tpu.memory_space<vmem>>, vector<1x8x128xf32>,
    return
  }
  func.func @transform_0(%arg0: i32) -> (i32, i32, i32, i32) {
    %c0_i32 = arith.constant 0 : i32
    %c0_i32_0 = arith.constant 0 : i32
    %c0_i32_1 = arith.constant 0 : i32
    %c0_i32_2 = arith.constant 0 : i32
    return %arg0, %c0_i32, %c0_i32_0, %c0_i32_1 : i32, i32, i32, i32
  }
  func.func @transform_1(%arg0: i32) -> (i32, i32) {
    %c0_i32 = arith.constant 0 : i32
    %c0_i32_0 = arith.constant 0 : i32
    %c0_i32_1 = arith.constant 0 : i32
    return %c0_i32, %c0_i32_0 : i32, i32
  }
  func.func @transform_2(%arg0: i32) -> (i32, i32) {
    %c0_i32 = arith.constant 0 : i32
    %c0_i32_0 = arith.constant 0 : i32
    %c0_i32_1 = arith.constant 0 : i32
    return %c0_i32, %c0_i32_0 : i32, i32
  }
  func.func @transform_3(%arg0: i32) -> (i32, i32) {
    %c0_i32 = arith.constant 0 : i32
    %c0_i32_0 = arith.constant 0 : i32
    %c0_i32_1 = arith.constant 0 : i32
    return %c0_i32, %c0_i32_0 : i32, i32
  }
  func.func @transform_4(%arg0: i32) -> (i32, i32) {
    %c0_i32 = arith.constant 0 : i32
    %c0_i32_0 = arith.constant 0 : i32
    %c0_i32_1 = arith.constant 0 : i32
    return %c0_i32, %c0_i32_0 : i32, i32
  }
  func.func @transform_5(%arg0: i32) -> (i32, i32, i32) {
    %c0_i32 = arith.constant 0 : i32
    %c0_i32_0 = arith.constant 0 : i32
    %c0_i32_1 = arith.constant 0 : i32
    return %arg0, %c0_i32, %c0_i32_0 : i32, i32, i32
  }
}

</mosaic_0001>

<llo_original>
// kernel: lime_loss.1
$region0: #{lime_loss.1}
  #allocation0 [shape = 'u32[]', space=smem, size = 0x4, offset = 0x4, fixed_abs, tag = 'smem constant byte address 0x4 - core index']
  #allocation1 [shape = 'u32[72,128]{1,0:T(1,128)}', space=vmem, size = 0x9000, scoped, tag = 'internal scratch']
  %s0 = inlined_call_operand.vmem [shape: f32[1,2,16,128], index: 0, kind: input, shape index: {}]
  %s1 = inlined_call_operand.vmem [shape: bf16[16,16], index: 1, kind: input, shape index: {}]
  %s2 = inlined_call_operand.vmem [shape: bf16[128,128], index: 2, kind: input, shape index: {}]
  %s3 = inlined_call_operand.vmem [shape: f32[16,128], index: 3, kind: input, shape index: {}]
  %s4 = inlined_call_operand.vmem [shape: f32[16,128], index: 4, kind: input, shape index: {}]
  %s5 = inlined_call_operand.vmem [shape: f32[1,8,128], index: 5, kind: output, shape index: {}]
  %s6 = sld [smem:[#allocation0]]
  $region30: #{lime_loss.1} parent=0
    _
  %s8 = ssub.s32 1, %s6
  %s9 = scalar_select 0, %s8, %s6
  // Predicated region
  $region2: #{lime_loss.1} parent=0 // pred_check
    _
  $region3: #{lime_loss.1} parent=0 // pred_check_branch
    %11 = sbr.rel (0) target = $region5
  $region4: #{lime_loss.1} parent=0 // pred_region
    _
  $region5: #{lime_loss.1} parent=0 // pred_fallthru
    _
  // Predicated region
  $region6: #{lime_loss.1} parent=0 // pred_check
    _
  $region7: #{lime_loss.1} parent=0 // pred_check_branch
    %13 = sbr.rel (0) target = $region9
  $region8: #{lime_loss.1} parent=0 // pred_region
    _
  $region9: #{lime_loss.1} parent=0 // pred_fallthru
    _
  // Predicated region
  $region10: #{lime_loss.1} parent=0 // pred_check
    _
  $region11: #{lime_loss.1} parent=0 // pred_check_branch
    %15 = sbr.rel (0) target = $region13
  $region12: #{lime_loss.1} parent=0 // pred_region
    _
  $region13: #{lime_loss.1} parent=0 // pred_fallthru
    _
  // Predicated region
  $region14: #{lime_loss.1} parent=0 // pred_check
    _
  $region15: #{lime_loss.1} parent=0 // pred_check_branch
    %17 = sbr.rel (0) target = $region17
  $region16: #{lime_loss.1} parent=0 // pred_region
    _
  $region17: #{lime_loss.1} parent=0 // pred_fallthru
    _
  // Predicated region
  $region18: #{lime_loss.1} parent=0 // pred_check
    _
  $region19: #{lime_loss.1} parent=0 // pred_check_branch
    %19 = sbr.rel (0) target = $region21
  $region20: #{lime_loss.1} parent=0 // pred_region
    _
  $region21: #{lime_loss.1} parent=0 // pred_fallthru
    _
  %v21 = vld [vmem:[%s0] sm:$0xff]
  %v22 = vld [vmem:[%s0 + $0x8] sm:$0xff]
  %s23 = scalar_lea.vmem %s0, 16
  %v24 = vld [vmem:[%s23] sm:$0xff]
  %v25 = vld [vmem:[%s23 + $0x8] sm:$0xff]
  %v26 = vld [vmem:[%s1] sm:$0xf]
  %v27 = vld [vmem:[%s1 + $0x4] sm:$0xf]
  %v28 = vld [vmem:[%s2] sm:$0xf]
  %v29 = vld [vmem:[%s2 + $0x4] sm:$0xf]
  %v30 = vld [vmem:[%s2 + $0x8] sm:$0xf]
  %v31 = vld [vmem:[%s2 + $0xc] sm:$0xf]
  %v32 = vld [vmem:[%s2 + $0x10] sm:$0xf]
  %v33 = vld [vmem:[%s2 + $0x14] sm:$0xf]
  %v34 = vld [vmem:[%s2 + $0x18] sm:$0xf]
  %v35 = vld [vmem:[%s2 + $0x1c] sm:$0xf]
  %v36 = vld [vmem:[%s2 + $0x20] sm:$0xf]
  %v37 = vld [vmem:[%s2 + $0x24] sm:$0xf]
  %v38 = vld [vmem:[%s2 + $0x28] sm:$0xf]
  %v39 = vld [vmem:[%s2 + $0x2c] sm:$0xf]
  %v40 = vld [vmem:[%s2 + $0x30] sm:$0xf]
  %v41 = vld [vmem:[%s2 + $0x34] sm:$0xf]
  %v42 = vld [vmem:[%s2 + $0x38] sm:$0xf]
  %v43 = vld [vmem:[%s2 + $0x3c] sm:$0xf]
  %v44 = vld [vmem:[%s3] sm:$0xff]
  %v45 = vld [vmem:[%s3 + $0x8] sm:$0xff]
  %v46 = vld [vmem:[%s4] sm:$0xff]
  %v47 = vld [vmem:[%s4 + $0x8] sm:$0xff]
  %50 = vrot.lane.b32.xlu0 %v24, 127
  %v51 = vpop.permute.xlu0 %50
  %52 = vrot.lane.b32.xlu0 %v25, 127
  %v53 = vpop.permute.xlu0 %52
  %v56 = vsub.f32 %v51, %v24
  %v57 = vsub.f32 %v53, %v25
  %v58 = vmul.f32 %v56, %v44
  %v59 = vmul.f32 %v57, %v45
  %v60 = vand.u32 2147483647, %v58
  %v61 = vand.u32 2147483647, %v59
  %v62 = vpack.c.bf16 %v61, %v60
  %v79 = vunpack.c.l.b16 %v28
  %v80 = vunpack.c.l.b16 %v29
  %v81 = vunpack.c.l.b16 %v30
  %v82 = vunpack.c.l.b16 %v31
  %v83 = vunpack.c.l.b16 %v32
  %v84 = vunpack.c.l.b16 %v33
  %v85 = vunpack.c.l.b16 %v34
  %v86 = vunpack.c.l.b16 %v35
  %v87 = vunpack.c.l.b16 %v36
  %v88 = vunpack.c.l.b16 %v37
  %v89 = vunpack.c.l.b16 %v38
  %v90 = vunpack.c.l.b16 %v39
  %v91 = vunpack.c.l.b16 %v40
  %v92 = vunpack.c.l.b16 %v41
  %v93 = vunpack.c.l.b16 %v42
  %v94 = vunpack.c.l.b16 %v43
  %v95 = vpack.c.b16 %v80, %v79
  %v96 = vpack.c.b16 %v82, %v81
  %v97 = vpack.c.b16 %v84, %v83
  %v98 = vpack.c.b16 %v86, %v85
  %v99 = vpack.c.b16 %v88, %v87
  %v100 = vpack.c.b16 %v90, %v89
  %v101 = vpack.c.b16 %v92, %v91
  %v102 = vpack.c.b16 %v94, %v93
  %111 = vmatpush.bf16.msra.mxu0 %v102
  %112 = vmatpush.bf16.msra.mxu0 %v101
  %113 = vmatpush.bf16.msra.mxu0 %v100
  %114 = vmatpush.bf16.msra.mxu0 %v99
  %115 = vmatpush.bf16.msra.mxu0 %v98
  %116 = vmatpush.bf16.msra.mxu0 %v97
  %117 = vmatpush.bf16.msra.mxu0 %v96
  %118 = vmatpush.bf16.msra.mxu0 %v95
  %119 = vmatmul.bf16.gmra.mxu0 %v62
  %v120 = vpop.f32.mrf.mxu0
  %v121 = vadd.f32 0.0, %v120
  %v122 = vpop.f32.mrf.mxu0
  %v123 = vadd.f32 0.0, %v122
  %124 = vdwg.mxu0
  %v125 = vpack.c.bf16 %v123, %v121
  %v128 = vunpack.c.l.b16 %v26
  %v129 = vunpack.c.l.b16 %v27
  %v130 = vpack.c.b16 %v129, %v128
  %vm131 = vcmask 130048
  %v133 = vsel %vm131, %v130, 0
  %135 = vmatpush.bf16.msra.mxu0 0
  %136 = vmatpush.bf16.msra.mxu0 0
  %137 = vmatpush.bf16.msra.mxu0 0
  %138 = vmatpush.bf16.msra.mxu0 0
  %139 = vmatpush.bf16.msra.mxu0 0
  %140 = vmatpush.bf16.msra.mxu0 0
  %141 = vmatpush.bf16.msra.mxu0 0
  %142 = vmatpush.bf16.msra.mxu0 %v125
  %143 = vmatmul.bf16.gmra.mxu0 %v133
  %v144 = vpop.f32.mrf.mxu0
  %v145 = vadd.f32 1e-06, %v144
  %v146 = vpop.f32.mrf.mxu0
  %v147 = vadd.f32 1e-06, %v146
  %148 = vdwg.mxu0
  %v149 = vrcp.pop %v145
  %v150 = vrcp.pop %v147
  %153 = vrot.lane.b32.xlu0 %v21, 127
  %v154 = vpop.permute.xlu0 %153
  %155 = vrot.lane.b32.xlu0 %v22, 127
  %v156 = vpop.permute.xlu0 %155
  %v159 = vsub.f32 %v154, %v21
  %v160 = vsub.f32 %v156, %v22
  %v161 = vmul.f32 %v159, %v44
  %v162 = vmul.f32 %v160, %v45
  %v163 = vmul.f32 %v161, %v161
  %v164 = vmul.f32 %v162, %v162
  %v165 = vmul.f32 %v163, %v149
  %v166 = vmul.f32 %v164, %v150
  %167 = vadd.xlane.f32.xlu0 %v165
  %v168 = vpop.xlane.xlu0 %167
  %169 = vadd.xlane.f32.xlu0 %v166
  %v170 = vpop.xlane.xlu0 %169
  %v171 = vadd.f32 %v168, %v170
  %v172 = vrot.slane %v171, 4
  %v173 = vadd.f32 %v171, %v172
  %v174 = vrot.slane %v173, 2
  %v175 = vadd.f32 %v173, %v174
  %v176 = vrot.slane %v175, 1
  %v177 = vadd.f32 %v175, %v176
  %vm178 = vcmask 1046528
  %v179 = vrot.slane %v24, 1
  %v180 = vrot.slane %v25, 1
  %v181 = vsel %vm178, %v179, %v180
  %v185 = vsel %vm178, %v180, %v179
  %v186 = vsub.f32 %v181, %v24
  %v187 = vsub.f32 %v185, %v25
  %v188 = vmul.f32 %v186, %v46
  %v189 = vmul.f32 %v187, %v47
  %v190 = vand.u32 2147483647, %v188
  %v191 = vand.u32 2147483647, %v189
  %v192 = vpack.c.bf16 %v191, %v190
  %193 = vmatpush.bf16.msra.mxu0 %v102
  %194 = vmatpush.bf16.msra.mxu0 %v101
  %195 = vmatpush.bf16.msra.mxu0 %v100
  %196 = vmatpush.bf16.msra.mxu0 %v99
  %197 = vmatpush.bf16.msra.mxu0 %v98
  %198 = vmatpush.bf16.msra.mxu0 %v97
  %199 = vmatpush.bf16.msra.mxu0 %v96
  %200 = vmatpush.bf16.msra.mxu0 %v95
  %201 = vmatmul.bf16.gmra.mxu0 %v192
  %v202 = vpop.f32.mrf.mxu0
  %v203 = vadd.f32 0.0, %v202
  %v204 = vpop.f32.mrf.mxu0
  %v205 = vadd.f32 0.0, %v204
  %206 = vdwg.mxu0
  %v207 = vpack.c.bf16 %v205, %v203
  %208 = vmatpush.bf16.msra.mxu0 0
  %209 = vmatpush.bf16.msra.mxu0 0
  %210 = vmatpush.bf16.msra.mxu0 0
  %211 = vmatpush.bf16.msra.mxu0 0
  %212 = vmatpush.bf16.msra.mxu0 0
  %213 = vmatpush.bf16.msra.mxu0 0
  %214 = vmatpush.bf16.msra.mxu0 0
  %215 = vmatpush.bf16.msra.mxu0 %v207
  %216 = vmatmul.bf16.gmra.mxu0 %v133
  %v217 = vpop.f32.mrf.mxu0
  %v218 = vadd.f32 1e-06, %v217
  %v219 = vpop.f32.mrf.mxu0
  %v220 = vadd.f32 1e-06, %v219
  %221 = vdwg.mxu0
  %v222 = vrcp.pop %v218
  %v223 = vrcp.pop %v220
  %v224 = vrot.slane %v21, 1
  %v225 = vrot.slane %v22, 1
  %v226 = vsel %vm178, %v224, %v225
  %v230 = vsel %vm178, %v225, %v224
  %v231 = vsub.f32 %v226, %v21
  %v232 = vsub.f32 %v230, %v22
  %v233 = vmul.f32 %v231, %v46
  %v234 = vmul.f32 %v232, %v47
  %v235 = vmul.f32 %v233, %v233
  %v236 = vmul.f32 %v234, %v234
  %v237 = vmul.f32 %v235, %v222
  %v238 = vmul.f32 %v236, %v223
  %239 = vadd.xlane.f32.xlu0 %v237
  %v240 = vpop.xlane.xlu0 %239
  %241 = vadd.xlane.f32.xlu0 %v238
  %v242 = vpop.xlane.xlu0 %241
  %v243 = vadd.f32 %v240, %v242
  %v244 = vrot.slane %v243, 4
  %v245 = vadd.f32 %v243, %v244
  %v246 = vrot.slane %v245, 2
  %v247 = vadd.f32 %v245, %v246
  %v248 = vrot.slane %v247, 1
  %v249 = vadd.f32 %v247, %v248
  %v250 = vadd.f32 %v177, %v249
  %v251 = vsub.f32 %v24, %v21
  %v252 = vsub.f32 %v25, %v22
  %v253 = vmul.f32 %v251, %v251
  %v254 = vmul.f32 %v252, %v252
  %255 = vadd.xlane.f32.xlu0 %v253
  %v256 = vpop.xlane.xlu0 %255
  %257 = vadd.xlane.f32.xlu0 %v254
  %v258 = vpop.xlane.xlu0 %257
  %v259 = vadd.f32 %v256, %v258
  %v260 = vrot.slane %v259, 4
  %v261 = vadd.f32 %v259, %v260
  %v262 = vrot.slane %v261, 2
  %v263 = vadd.f32 %v261, %v262
  %v264 = vrot.slane %v263, 1
  %v265 = vadd.f32 %v263, %v264
  %v266 = vlaneseq
  %v267 = vshrl.u32 %v266, 7
  %vm268 = vcmp.eq.s32.totalorder %v267, 0
  %vm269 = vcmp.eq.s32.totalorder %v267, 1
  %v270 = vsel %vm269, %v250, 0.0
  %v271 = vsel %vm268, %v265, %v270
  %272 = vst [vmem:[%s5] sm:$0xff] %v271
  // Predicated region
  $region22: #{lime_loss.1} parent=0 // pred_check
    _
  $region23: #{lime_loss.1} parent=0 // pred_check_branch
    %274 = sbr.rel (0) target = $region25
  $region24: #{lime_loss.1} parent=0 // pred_region
    _
  $region25: #{lime_loss.1} parent=0 // pred_fallthru
    _
  // Predicated region
  $region26: #{lime_loss.1} parent=0 // pred_check
    _
  $region27: #{lime_loss.1} parent=0 // pred_check_branch
    %276 = sbr.rel (0) target = $region29
  $region28: #{lime_loss.1} parent=0 // pred_region
    _
  $region29: #{lime_loss.1} parent=0 // pred_fallthru
    _

</llo_original>
